<compile_context>
chip_gen: v7x
topology: tpu7x:2x2x1
jax: 0.10.0
libtpu: 0.0.40
codegen_flags: <defaults>
</compile_context>

<pallas_src>
import jax
import jax.numpy as jnp
from jax.experimental import pallas as pl
from jax.experimental.pallas import tpu as pltpu


def _bpr_loss_kernel(logit_ref, partial_ref):
    i = pl.program_id(0)
    x = logit_ref[...].astype(jnp.float32)            # (TM, B), upcast in VMEM
    tm, b = x.shape

    # Global row index of each sublane row in this tile: one (TM,1) iota.
    row = jax.lax.broadcasted_iota(jnp.int32, (tm, 1), 0) + i * tm   # (TM, 1)
    col = jax.lax.broadcasted_iota(jnp.int32, (tm, b), 1)            # (TM, B)

    # diag[r] = logit[r, r] via masked row-sum (XLU), no gather.
    diag = jnp.sum(jnp.where(col == row, x, 0.0), axis=1, keepdims=True)  # (TM, 1)

    # diff[r, c] = logit[r, r] - logit[r, c]
    diff = diag - x

    # Numerically stable log-sigmoid: min(d, 0) - log1p(exp(-|d|))
    logsig = jnp.minimum(diff, 0.0) - jnp.log1p(jnp.exp(-jnp.abs(diff)))

    # Zero-out rows past the true matrix size (padded last tile when B % TM != 0).
    logsig = jnp.where(row < b, logsig, 0.0)

    # Lane-dense per-tile partial: column sums over this tile's rows.
    partial_ref[...] = jnp.sum(logsig, axis=0, keepdims=True)        # (1, B)


def _choose_tm(b: int, elem_bytes: int) -> int:
    """Row-tile height: ~4 MiB per pipeline buffer, multiple of 8 sublanes."""
    target_bytes = 4 * 1024 * 1024
    tm = max(1, target_bytes // max(1, b * elem_bytes))
    if tm >= b:
        return b
    return max(8, (tm // 8) * 8)


def bpr_loss(logit: jax.Array, tm=None) -> jax.Array:
    """Pallas BPR loss. `logit` must be a square (B, B) float matrix (any float dtype)."""
    assert logit.ndim == 2 and logit.shape[0] == logit.shape[1]
    b = logit.shape[0]

    if tm is None:
        tm = _choose_tm(b, logit.dtype.itemsize)
    tm = min(tm, b)
    if tm < b:
        tm = max(8, (tm // 8) * 8)   # sublane alignment when not the full dim

    num_tiles = pl.cdiv(b, tm)

    partials = pl.pallas_call(
        _bpr_loss_kernel,
        out_shape=jax.ShapeDtypeStruct((num_tiles, 1, b), jnp.float32),
        grid=(num_tiles,),
        in_specs=[pl.BlockSpec((tm, b), lambda i: (i, 0))],
        out_specs=pl.BlockSpec((None, 1, b), lambda i: (i, 0, 0)),
        compiler_params=pltpu.CompilerParams(
            dimension_semantics=("parallel",)),
    )(logit)

    # Tiny final reduction + negate/scale in plain JAX (scale computed at f64).
    return jnp.sum(partials) * jnp.float32(-1.0 / (b * b))


def _bpr_loss_ref(logit: jax.Array) -> jax.Array:
    # Pure-JAX reference mirroring the PyTorch module (computed in f32).
    logit = logit.astype(jnp.float32)
    diag = jnp.diag(logit)[:, None]
    diff = diag - logit
    return -jnp.mean(jax.nn.log_sigmoid(diff))


if __name__ == "__main__":
    k1, k2 = jax.random.split(jax.random.PRNGKey(0))

    # Case 1: f32 input, B not a multiple of the tile -> multi-tile grid plus
    # padded-row masking on the last tile.
    b1 = 200
    logit1 = jax.random.normal(k1, (b1, b1), dtype=jnp.float32)
    loss1 = jax.block_until_ready(bpr_loss(logit1, tm=64))
    ref1 = jax.block_until_ready(_bpr_loss_ref(logit1))
    assert jnp.allclose(loss1, ref1, atol=1e-5, rtol=1e-5), (loss1, ref1)

    # Case 2: bf16 input stays bf16 across HBM; upcast to f32 inside the kernel.
    b2 = 128
    logit2 = jax.random.normal(k2, (b2, b2), dtype=jnp.float32).astype(jnp.bfloat16)
    loss2 = jax.block_until_ready(bpr_loss(logit2))
    ref2 = jax.block_until_ready(_bpr_loss_ref(logit2))
    assert jnp.allclose(loss2, ref2, atol=2e-3, rtol=2e-3), (loss2, ref2)

    print("KERNEL_OK")
</pallas_src>

<mosaic_0001>
module attributes {stable_mosaic.version = 11 : i64} {
  func.func @_bpr_loss_kernel(%arg0: i32, %arg1: memref<64x200xf32, #tpu.memory_space<vmem>>, %arg2: memref<1x1x200xf32, #tpu.memory_space<vmem>>) attributes {dimension_semantics = [#tpu.dimension_semantics<parallel>], iteration_bounds = array<i64: 4>, scalar_prefetch = 0 : i64, scratch_operands = 0 : i64, tpu.core_type = #tpu.core_type<tc>, window_params = [{transform_indices = @transform_0, window_bounds = array<i64: 64, 200>}, {transform_indices = @transform_1, window_bounds = array<i64: 1, 1, 200>}]} {
    %c0 = arith.constant 0 : index
    %c0_0 = arith.constant 0 : index
    %0 = vector.load %arg1[%c0, %c0_0] : memref<64x200xf32, #tpu.memory_space<vmem>>, vector<64x200xf32>
    %1 = tpu.iota {dimensions = array<i32: 0>} : vector<64x1xi32>
    %c64_i32 = arith.constant 64 : i32
    %2 = arith.muli %arg0, %c64_i32 : i32
    %3 = vector.broadcast %2 : i32 to vector<64x1xi32>
    %4 = arith.addi %1, %3 : vector<64x1xi32>
    %5 = tpu.iota {dimensions = array<i32: 1>} : vector<64x200xi32>
    %6 = vector.broadcast %4 : vector<64x1xi32> to vector<64x200xi32>
    %7 = arith.cmpi eq, %5, %6 : vector<64x200xi32>
    %cst = arith.constant 0.000000e+00 : f32
    %8 = vector.broadcast %cst : f32 to vector<64x200xf32>
    %9 = arith.select %7, %0, %8 : vector<64x200xi1>, vector<64x200xf32>
    %cst_1 = arith.constant dense<0.000000e+00> : vector<64xf32>
    %10 = vector.multi_reduction <add>, %9, %cst_1 [1] : vector<64x200xf32> to vector<64xf32>
    %11 = vector.shape_cast %10 : vector<64xf32> to vector<64x1xf32>
    %12 = vector.broadcast %11 : vector<64x1xf32> to vector<64x200xf32>
    %13 = arith.subf %12, %0 : vector<64x200xf32>
    %cst_2 = arith.constant 0.000000e+00 : f32
    %14 = vector.broadcast %cst_2 : f32 to vector<64x200xf32>
    %15 = arith.minimumf %13, %14 : vector<64x200xf32>
    %16 = math.absf %13 : vector<64x200xf32>
    %cst_3 = arith.constant 0.000000e+00 : f32
    %17 = vector.broadcast %cst_3 : f32 to vector<64x200xf32>
    %18 = arith.subf %17, %16 : vector<64x200xf32>
    %19 = math.exp %18 : vector<64x200xf32>
    %20 = math.log1p %19 : vector<64x200xf32>
    %21 = arith.subf %15, %20 : vector<64x200xf32>
    %c200_i32 = arith.constant 200 : i32
    %22 = vector.broadcast %c200_i32 : i32 to vector<64x1xi32>
    %23 = arith.cmpi slt, %4, %22 : vector<64x1xi32>
    %cst_4 = arith.constant 0.000000e+00 : f32
    %24 = vector.shape_cast %23 : vector<64x1xi1> to vector<64x1xi1>
    %25 = vector.broadcast %24 : vector<64x1xi1> to vector<64x200xi1>
    %26 = vector.broadcast %cst_4 : f32 to vector<64x200xf32>
    %27 = arith.select %25, %21, %26 : vector<64x200xi1>, vector<64x200xf32>
    %cst_5 = arith.constant dense<0.000000e+00> : vector<200xf32>
    %28 = vector.multi_reduction <add>, %27, %cst_5 [0] : vector<64x200xf32> to vector<200xf32>
    %29 = vector.shape_cast %28 : vector<200xf32> to vector<1x200xf32>
    %c0_6 = arith.constant 0 : index
    %c0_7 = arith.constant 0 : index
    %c0_8 = arith.constant 0 : index
    %30 = vector.load %arg2[%c0_6, %c0_7, %c0_8] : memref<1x1x200xf32, #tpu.memory_space<vmem>>, vector<1x1x200xf32>
    %31 = vector.shape_cast %30 : vector<1x1x200xf32> to vector<1x200xf32>
    %32 = vector.shape_cast %29 : vector<1x200xf32> to vector<1x1x200xf32>
    tpu.vector_store %arg2[%c0_6, %c0_7, %c0_8], %32 {strides = array<i32>} : memref<1x1x200xf32, #tpu.memory_space<vmem>>, vector<1x1x200xf32>,
    return
  }
  func.func @transform_0(%arg0: i32) -> (i32, i32) {
    %c0_i32 = arith.constant 0 : i32
    %c0_i32_0 = arith.constant 0 : i32
    return %arg0, %c0_i32 : i32, i32
  }
  func.func @transform_1(%arg0: i32) -> (i32, i32, i32) {
    %c0_i32 = arith.constant 0 : i32
    %c0_i32_0 = arith.constant 0 : i32
    %c0_i32_1 = arith.constant 0 : i32
    return %arg0, %c0_i32, %c0_i32_0 : i32, i32, i32
  }
}

</mosaic_0001>

<llo_original>
// kernel: tpu_custom_call.1
$region0: #{tpu_custom_call.1}
  #allocation0 [shape = 'u32[]', space=smem, size = 0x4, offset = 0x4, fixed_abs, tag = 'smem constant byte address 0x4 - core index']
  #allocation1 [shape = 'u32[144,128]{1,0:T(1,128)}', space=vmem, size = 0x12000, scoped, tag = 'internal scratch']
  %s0 = inlined_call_operand.hbm [shape: f32[200,200], index: 0, kind: input, shape index: {}]
  %s1 = inlined_call_operand.hbm [shape: f32[4,1,200], index: 1, kind: output, shape index: {}]
  %s2 = sld [smem:[#allocation0]]
  $region41: #{tpu_custom_call.1} parent=0
    _
  %s4 = ssub.s32 1, %s2
  %s5 = scalar_select 0, %s4, %s2
  $region1: #{tpu_custom_call.1} parent=0
    #allocation2 [shape = 'u8[131072]{0}', space=vmem, size = 0x20000, scoped, tag = 'input window, operand 0']
    #allocation3 [shape = 's32[2]{0}', space=sflag, size = 0x8, scoped, tag = 'scoped memory for tpu_custom_call.1']
    #allocation4 [shape = 's32[2]{0}', space=sflag, size = 0x8, scoped, tag = 'scoped memory for tpu_custom_call.1']
    #allocation5 [shape = 'u8[2048]{0}', space=vmem, size = 0x800, scoped, tag = 'output window, operand 0']
    %6 = vsyncpa [#allocation3], 0
    %s7 = scalar_lea.sflag [#allocation3], 1
    %8 = vsyncpa %s7, 0
    %9 = vsyncpa [#allocation4], 0
    %s10 = scalar_lea.sflag [#allocation4], 1
    %11 = vsyncpa %s10, 0
    loop: start=0, step=1, limit=6
    $region2: #{tpu_custom_call.1} parent=1 // loop_pre_header
      _
    $region3: #{tpu_custom_call.1} parent=1 // loop_header
      %s13 = sphi 0, %s17
      %p14 = scmp.ge.s32.totalorder %s13, 6
      %s23 = sphi 0, %s25
      %s26 = sphi 0, %s23
      %s27 = sphi 0, %s26
      %s43 = sphi 0, %s27
      %s49 = sphi 0, %s51
      %s52 = sphi 0, %s49
      %s53 = sphi 0, %s52
      %s69 = sphi 0, %s53
    $region4: #{tpu_custom_call.1} parent=1 // loop_header_branch
      %16 = sbr.rel (%p14) target = $region8
    $region5: #{tpu_custom_call.1} parent=1 // loop_body
      %s18 = ssub.s32 %s13, 1
      %s19 = ssub.s32 %s13, 2
      %s20 = sadd.s32 %s13, 1
      %s21 = ssub.s32 %s13, %s20
      %p22 = scmp.eq.s32.totalorder %s21, 0
      %s24 = sadd.s32 %s23, 1
      %s25 = scalar_select %p22, %s23, %s24
      %p28 = pneg %p22
      %p29 = scmp.eq.s32.totalorder %s13, 3
      %p30 = por %p28, %p29
      %p31 = scmp.ne.s32.totalorder %s23, %s26
      %p32 = scmp.eq.s32.totalorder %s13, 0
      %p33 = por %p31, %p32
      %p34 = scmp.ne.s32.totalorder %s23, %s26
      %p35 = scmp.eq.s32.totalorder %s18, 3
      %p36 = por %p34, %p35
      %p37 = scmp.ne.s32.totalorder %s26, %s27
      %p38 = scmp.eq.s32.totalorder %s18, 0
      %p39 = por %p37, %p38
      %p40 = scmp.ne.s32.totalorder %s26, %s27
      %p41 = scmp.eq.s32.totalorder %s19, 3
      %p42 = por %p40, %p41
      %p44 = scmp.ne.s32.totalorder %s27, %s43
      %p45 = scmp.eq.s32.totalorder %s19, 0
      %p46 = por %p44, %p45
      %s47 = ssub.s32 %s13, %s20
      %p48 = scmp.eq.s32.totalorder %s47, 0
      %s50 = sadd.s32 %s49, 1
      %s51 = scalar_select %p48, %s49, %s50
      %p54 = pneg %p48
      %p55 = scmp.eq.s32.totalorder %s13, 3
      %p56 = por %p54, %p55
      %p57 = scmp.ne.s32.totalorder %s49, %s52
      %p58 = scmp.eq.s32.totalorder %s13, 0
      %p59 = por %p57, %p58
      %p60 = scmp.ne.s32.totalorder %s49, %s52
      %p61 = scmp.eq.s32.totalorder %s18, 3
      %p62 = por %p60, %p61
      %p63 = scmp.ne.s32.totalorder %s52, %s53
      %p64 = scmp.eq.s32.totalorder %s18, 0
      %p65 = por %p63, %p64
      %p66 = scmp.ne.s32.totalorder %s52, %s53
      %p67 = scmp.eq.s32.totalorder %s19, 3
      %p68 = por %p66, %p67
      %p70 = scmp.ne.s32.totalorder %s53, %s69
      %p71 = scmp.eq.s32.totalorder %s19, 0
      %p72 = por %p70, %p71
      %p73 = scmp.le.s32.totalorder 1, %s13
      %p74 = scmp.lt.s32.totalorder %s13, 5
      %p75 = pnand %p73, %p74
      %p76 = pneg %p75
      // Predicated region
      $region9: #{tpu_custom_call.1} parent=5 // pred_check
        _
      $region10: #{tpu_custom_call.1} parent=5 // pred_check_branch
        %78 = sbr.rel (%p75) target = $region12
      $region11: #{tpu_custom_call.1} parent=5 // pred_region
        %s79 = ssub.s32 %s13, 1
      $region12: #{tpu_custom_call.1} parent=5 // pred_fallthru
        _
      %p80 = scmp.lt.s32.totalorder %s13, 4
      // Predicated region
      $region13: #{tpu_custom_call.1} parent=5 // pred_check
        %p81 = pneg %p80
      $region14: #{tpu_custom_call.1} parent=5 // pred_check_branch
        %83 = sbr.rel (%p81) target = $region16
      $region15: #{tpu_custom_call.1} parent=5 // pred_region
        // Predicated region
        $region17: #{tpu_custom_call.1} parent=15 // pred_check
          %p84 = pneg %p33
        $region18: #{tpu_custom_call.1} parent=15 // pred_check_branch
          %86 = sbr.rel (%p84) target = $region20
        $region19: #{tpu_custom_call.1} parent=15 // pred_region
          %s87 = sand.u32 %s23, 1
          %s88 = scalar_lea.sflag [#allocation3], %s87
          %s89 = sand.u32 %s23, 1
          %s90 = smul.addr %s89, 128
          %s91 = scalar_lea.vmem [#allocation2], %s90
          %s92 = smul.u32 8, %s13
          %s93 = ssub.s32 25, %s92
          %p94 = scmp.lt.s32.totalorder %s93, 8
          %s95 = scalar_select %p94, %s93, 8
          %s96 = smul.u32 128, %s95
          %s97 = smul.u32 %s96, 2
          %s99 = ssub.s32 2048, %s97
          %100 = vsyncadd %s88, %s99
          %p101 = scmp.ne.s32.totalorder 0, %s97
          %s102 = smul.addr %s92, 2
          %s103 = smul.addr %s102, 128
          %s104 = scalar_lea.hbm %s0, %s103
          %s105 = smul.u32 16, %s95
          %s106 = sshll.u32 %s91, 4
          %s107 = int_to_ptr.vmem [resolvable:$true] %s106
          %s108 = sshll.u32 %s105, 4
          %112 = dma.hbm_to_vmem [thread:$0]  (%p101), %s104, %s108, %s107, %s88, 256, 256, 16
        $region20: #{tpu_custom_call.1} parent=15 // pred_fallthru
          _
      $region16: #{tpu_custom_call.1} parent=5 // pred_fallthru
        _
      %p113 = scmp.le.s32.totalorder 1, %s13
      %p114 = scmp.lt.s32.totalorder %s13, 5
      %p115 = pnand %p113, %p114
      %p116 = pneg %p115
      // Predicated region
      $region21: #{tpu_custom_call.1} parent=5 // pred_check
        _
      $region22: #{tpu_custom_call.1} parent=5 // pred_check_branch
        %118 = sbr.rel (%p115) target = $region24
      $region23: #{tpu_custom_call.1} parent=5 // pred_region
        %s119 = ssub.s32 %s13, 1
        %s120 = sand.u32 %s26, 1
        %s121 = scalar_lea.sflag [#allocation3], %s120
        %s122 = sand.u32 %s26, 1
        %s123 = smul.addr %s122, 128
        %s124 = scalar_lea.vmem [#allocation2], %s123
        // Predicated region
        $region25: #{tpu_custom_call.1} parent=23 // pred_check
          %p125 = pneg %p39
        $region26: #{tpu_custom_call.1} parent=23 // pred_check_branch
          %127 = sbr.rel (%p125) target = $region28
        $region27: #{tpu_custom_call.1} parent=23 // pred_region
          %128 = dma.done %s121, 2048
        $region28: #{tpu_custom_call.1} parent=23 // pred_fallthru
          _
        %s129 = sand.u32 %s26, 1
        %s130 = scalar_lea.sflag [#allocation3], %s129
        %s131 = sand.u32 %s26, 1
        %s132 = smul.addr %s131, 128
        %s133 = scalar_lea.vmem [#allocation2], %s132
        %p134 = pneg %p39
        %p135 = pneg %p36
        %p136 = pneg %p65
        %p137 = pneg %p62
        %s138 = sand.u32 %s52, 1
        %s139 = scalar_lea.sflag [#allocation4], %s138
        %s140 = sand.u32 %s52, 1
        %s141 = smul.addr %s140, 2
        %s142 = scalar_lea.vmem [#allocation5], %s141
        %s143 = smul.u32 8, %s18
        %s144 = ssub.s32 25, %s143
        %p145 = scmp.lt.s32.totalorder %s144, 8
        %s146 = scalar_select %p145, %s144, 8
        %s147 = smul.u32 128, %s146
        %s148 = smul.u32 %s147, 2
        %v149 = vld [vmem:[%s124] sm:$0xff]
        %v150 = vld [vmem:[%s124 + $0x8] sm:$0xff]
        %v151 = vld [vmem:[%s124 + $0x10] sm:$0xff]
        %v152 = vld [vmem:[%s124 + $0x18] sm:$0xff]
        %v153 = vld [vmem:[%s124 + $0x20] sm:$0xff]
        %v154 = vld [vmem:[%s124 + $0x28] sm:$0xff]
        %v155 = vld [vmem:[%s124 + $0x30] sm:$0xff]
        %v156 = vld [vmem:[%s124 + $0x38] sm:$0xff]
        %v157 = vld [vmem:[%s124 + $0x40] sm:$0xff]
        %v158 = vld [vmem:[%s124 + $0x48] sm:$0xff]
        %v159 = vld [vmem:[%s124 + $0x50] sm:$0xff]
        %v160 = vld [vmem:[%s124 + $0x58] sm:$0xff]
        %v161 = vld [vmem:[%s124 + $0x60] sm:$0xff]
        %v162 = vld [vmem:[%s124 + $0x68] sm:$0xff]
        %v163 = vld [vmem:[%s124 + $0x70] sm:$0xff]
        %v164 = vld [vmem:[%s124 + $0x78] sm:$0xff]
        %v165 = vlaneseq
        %v166 = vshrl.u32 %v165, 7
        %v167 = vadd.s32 %v166, 8
        %v168 = vadd.s32 %v166, 16
        %v169 = vadd.s32 %v166, 24
        %v170 = vadd.s32 %v166, 32
        %v171 = vadd.s32 %v166, 40
        %v172 = vadd.s32 %v166, 48
        %v173 = vadd.s32 %v166, 56
        %s174 = smul.u32 %s18, 64
        %v175 = vstv %s174
        %v176 = vadd.s32 %v166, %v175
        %v177 = vadd.s32 %v167, %v175
        %v178 = vadd.s32 %v168, %v175
        %v179 = vadd.s32 %v169, %v175
        %v180 = vadd.s32 %v170, %v175
        %v181 = vadd.s32 %v171, %v175
        %v182 = vadd.s32 %v172, %v175
        %v183 = vadd.s32 %v173, %v175
        %v184 = vlaneseq
        %v185 = vand.u32 %v184, 127
        %v186 = vadd.s32 %v185, 128
        %vm187 = vcmp.eq.s32.totalorder %v185, %v176
        %vm188 = vcmp.eq.s32.totalorder %v186, %v176
        %vm189 = vcmp.eq.s32.totalorder %v185, %v177
        %vm190 = vcmp.eq.s32.totalorder %v186, %v177
        %vm191 = vcmp.eq.s32.totalorder %v185, %v178
        %vm192 = vcmp.eq.s32.totalorder %v186, %v178
        %vm193 = vcmp.eq.s32.totalorder %v185, %v179
        %vm194 = vcmp.eq.s32.totalorder %v186, %v179
        %vm195 = vcmp.eq.s32.totalorder %v185, %v180
        %vm196 = vcmp.eq.s32.totalorder %v186, %v180
        %vm197 = vcmp.eq.s32.totalorder %v185, %v181
        %vm198 = vcmp.eq.s32.totalorder %v186, %v181
        %vm199 = vcmp.eq.s32.totalorder %v185, %v182
        %vm200 = vcmp.eq.s32.totalorder %v186, %v182
        %vm201 = vcmp.eq.s32.totalorder %v185, %v183
        %vm202 = vcmp.eq.s32.totalorder %v186, %v183
        %v203 = vsel %vm187, %v149, 0.0
        %v204 = vsel %vm188, %v150, 0.0
        %v205 = vsel %vm189, %v151, 0.0
        %v206 = vsel %vm190, %v152, 0.0
        %v207 = vsel %vm191, %v153, 0.0
        %v208 = vsel %vm192, %v154, 0.0
        %v209 = vsel %vm193, %v155, 0.0
        %v210 = vsel %vm194, %v156, 0.0
        %v211 = vsel %vm195, %v157, 0.0
        %v212 = vsel %vm196, %v158, 0.0
        %v213 = vsel %vm197, %v159, 0.0
        %v214 = vsel %vm198, %v160, 0.0
        %v215 = vsel %vm199, %v161, 0.0
        %v216 = vsel %vm200, %v162, 0.0
        %v217 = vsel %vm201, %v163, 0.0
        %v218 = vsel %vm202, %v164, 0.0
        %vm219 = vcmask 588800
        %v220 = vsel %vm219, %v204, 0.0
        %v221 = vadd.f32 %v203, %v220
        %222 = vadd.xlane.f32.xlu0 %v221
        %v223 = vpop.xlane.xlu0 %222
        %v224 = vsel %vm219, %v206, 0.0
        %v225 = vadd.f32 %v205, %v224
        %226 = vadd.xlane.f32.xlu0 %v225
        %v227 = vpop.xlane.xlu0 %226
        %v228 = vsel %vm219, %v208, 0.0
        %v229 = vadd.f32 %v207, %v228
        %230 = vadd.xlane.f32.xlu0 %v229
        %v231 = vpop.xlane.xlu0 %230
        %v232 = vsel %vm219, %v210, 0.0
        %v233 = vadd.f32 %v209, %v232
        %234 = vadd.xlane.f32.xlu0 %v233
        %v235 = vpop.xlane.xlu0 %234
        %v236 = vsel %vm219, %v212, 0.0
        %v237 = vadd.f32 %v211, %v236
        %238 = vadd.xlane.f32.xlu0 %v237
        %v239 = vpop.xlane.xlu0 %238
        %v240 = vsel %vm219, %v214, 0.0
        %v241 = vadd.f32 %v213, %v240
        %242 = vadd.xlane.f32.xlu0 %v241
        %v243 = vpop.xlane.xlu0 %242
        %v244 = vsel %vm219, %v216, 0.0
        %v245 = vadd.f32 %v215, %v244
        %246 = vadd.xlane.f32.xlu0 %v245
        %v247 = vpop.xlane.xlu0 %246
        %v248 = vsel %vm219, %v218, 0.0
        %v249 = vadd.f32 %v217, %v248
        %250 = vadd.xlane.f32.xlu0 %v249
        %v251 = vpop.xlane.xlu0 %250
        %v252 = vsub.f32 %v223, %v149
        %v253 = vsub.f32 %v223, %v150
        %v254 = vsub.f32 %v227, %v151
        %v255 = vsub.f32 %v227, %v152
        %v256 = vsub.f32 %v231, %v153
        %v257 = vsub.f32 %v231, %v154
        %v258 = vsub.f32 %v235, %v155
        %v259 = vsub.f32 %v235, %v156
        %v260 = vsub.f32 %v239, %v157
        %v261 = vsub.f32 %v239, %v158
        %v262 = vsub.f32 %v243, %v159
        %v263 = vsub.f32 %v243, %v160
        %v264 = vsub.f32 %v247, %v161
        %v265 = vsub.f32 %v247, %v162
        %v266 = vsub.f32 %v251, %v163
        %v267 = vsub.f32 %v251, %v164
        %v268 = vmin.f32 %v252, 0.0
        %v269 = vmin.f32 %v253, 0.0
        %v270 = vmin.f32 %v254, 0.0
        %v271 = vmin.f32 %v255, 0.0
        %v272 = vmin.f32 %v256, 0.0
        %v273 = vmin.f32 %v257, 0.0
        %v274 = vmin.f32 %v258, 0.0
        %v275 = vmin.f32 %v259, 0.0
        %v276 = vmin.f32 %v260, 0.0
        %v277 = vmin.f32 %v261, 0.0
        %v278 = vmin.f32 %v262, 0.0
        %v279 = vmin.f32 %v263, 0.0
        %v280 = vmin.f32 %v264, 0.0
        %v281 = vmin.f32 %v265, 0.0
        %v282 = vmin.f32 %v266, 0.0
        %v283 = vmin.f32 %v267, 0.0
        %v284 = vand.u32 2147483647, %v252
        %v285 = vand.u32 2147483647, %v253
        %v286 = vand.u32 2147483647, %v254
        %v287 = vand.u32 2147483647, %v255
        %v288 = vand.u32 2147483647, %v256
        %v289 = vand.u32 2147483647, %v257
        %v290 = vand.u32 2147483647, %v258
        %v291 = vand.u32 2147483647, %v259
        %v292 = vand.u32 2147483647, %v260
        %v293 = vand.u32 2147483647, %v261
        %v294 = vand.u32 2147483647, %v262
        %v295 = vand.u32 2147483647, %v263
        %v296 = vand.u32 2147483647, %v264
        %v297 = vand.u32 2147483647, %v265
        %v298 = vand.u32 2147483647, %v266
        %v299 = vand.u32 2147483647, %v267
        %v300 = vsub.f32 0.0, %v284
        %v301 = vsub.f32 0.0, %v285
        %v302 = vsub.f32 0.0, %v286
        %v303 = vsub.f32 0.0, %v287
        %v304 = vsub.f32 0.0, %v288
        %v305 = vsub.f32 0.0, %v289
        %v306 = vsub.f32 0.0, %v290
        %v307 = vsub.f32 0.0, %v291
        %v308 = vsub.f32 0.0, %v292
        %v309 = vsub.f32 0.0, %v293
        %v310 = vsub.f32 0.0, %v294
        %v311 = vsub.f32 0.0, %v295
        %v312 = vsub.f32 0.0, %v296
        %v313 = vsub.f32 0.0, %v297
        %v314 = vsub.f32 0.0, %v298
        %v315 = vsub.f32 0.0, %v299
        %v316 = vmul.f32 %v300, 1.442695
        %v317 = vpow.pop %v316
        %v318 = vmul.f32 %v301, 1.442695
        %v319 = vpow.pop %v318
        %v320 = vmul.f32 %v302, 1.442695
        %v321 = vpow.pop %v320
        %v322 = vmul.f32 %v303, 1.442695
        %v323 = vpow.pop %v322
        %v324 = vmul.f32 %v304, 1.442695
        %v325 = vpow.pop %v324
        %v326 = vmul.f32 %v305, 1.442695
        %v327 = vpow.pop %v326
        %v328 = vmul.f32 %v306, 1.442695
        %v329 = vpow.pop %v328
        %v330 = vmul.f32 %v307, 1.442695
        %v331 = vpow.pop %v330
        %v332 = vmul.f32 %v308, 1.442695
        %v333 = vpow.pop %v332
        %v334 = vmul.f32 %v309, 1.442695
        %v335 = vpow.pop %v334
        %v336 = vmul.f32 %v310, 1.442695
        %v337 = vpow.pop %v336
        %v338 = vmul.f32 %v311, 1.442695
        %v339 = vpow.pop %v338
        %v340 = vmul.f32 %v312, 1.442695
        %v341 = vpow.pop %v340
        %v342 = vmul.f32 %v313, 1.442695
        %v343 = vpow.pop %v342
        %v344 = vmul.f32 %v314, 1.442695
        %v345 = vpow.pop %v344
        %v346 = vmul.f32 %v315, 1.442695
        %v347 = vpow.pop %v346
        %v348 = vadd.f32 %v317, 1.0
        %v349 = vlog2.pop %v348
        %v350 = vmul.f32 %v349, 0.6931472
        %v351 = vmul.f32 -0.5, %v317
        %v352 = vadd.f32 %v351, 1.0
        %v353 = vmul.f32 %v352, %v317
        %v354 = vand.u32 2147483647, %v317
        %vm355 = vcmp.lt.f32.partialorder %v354, 0.0004427343
        %v356 = vsel %vm355, %v353, %v350
        %v357 = vadd.f32 %v319, 1.0
        %v358 = vlog2.pop %v357
        %v359 = vmul.f32 %v358, 0.6931472
        %v360 = vmul.f32 -0.5, %v319
        %v361 = vadd.f32 %v360, 1.0
        %v362 = vmul.f32 %v361, %v319
        %v363 = vand.u32 2147483647, %v319
        %vm364 = vcmp.lt.f32.partialorder %v363, 0.0004427343
        %v365 = vsel %vm364, %v362, %v359
        %v366 = vadd.f32 %v321, 1.0
        %v367 = vlog2.pop %v366
        %v368 = vmul.f32 %v367, 0.6931472
        %v369 = vmul.f32 -0.5, %v321
        %v370 = vadd.f32 %v369, 1.0
        %v371 = vmul.f32 %v370, %v321
        %v372 = vand.u32 2147483647, %v321
        %vm373 = vcmp.lt.f32.partialorder %v372, 0.0004427343
        %v374 = vsel %vm373, %v371, %v368
        %v375 = vadd.f32 %v323, 1.0
        %v376 = vlog2.pop %v375
        %v377 = vmul.f32 %v376, 0.6931472
        %v378 = vmul.f32 -0.5, %v323
        %v379 = vadd.f32 %v378, 1.0
        %v380 = vmul.f32 %v379, %v323
        %v381 = vand.u32 2147483647, %v323
        %vm382 = vcmp.lt.f32.partialorder %v381, 0.0004427343
        %v383 = vsel %vm382, %v380, %v377
        %v384 = vadd.f32 %v325, 1.0
        %v385 = vlog2.pop %v384
        %v386 = vmul.f32 %v385, 0.6931472
        %v387 = vmul.f32 -0.5, %v325
        %v388 = vadd.f32 %v387, 1.0
        %v389 = vmul.f32 %v388, %v325
        %v390 = vand.u32 2147483647, %v325
        %vm391 = vcmp.lt.f32.partialorder %v390, 0.0004427343
        %v392 = vsel %vm391, %v389, %v386
        %v393 = vadd.f32 %v327, 1.0
        %v394 = vlog2.pop %v393
        %v395 = vmul.f32 %v394, 0.6931472
        %v396 = vmul.f32 -0.5, %v327
        %v397 = vadd.f32 %v396, 1.0
        %v398 = vmul.f32 %v397, %v327
        %v399 = vand.u32 2147483647, %v327
        %vm400 = vcmp.lt.f32.partialorder %v399, 0.0004427343
        %v401 = vsel %vm400, %v398, %v395
        %v402 = vadd.f32 %v329, 1.0
        %v403 = vlog2.pop %v402
        %v404 = vmul.f32 %v403, 0.6931472
        %v405 = vmul.f32 -0.5, %v329
        %v406 = vadd.f32 %v405, 1.0
        %v407 = vmul.f32 %v406, %v329
        %v408 = vand.u32 2147483647, %v329
        %vm409 = vcmp.lt.f32.partialorder %v408, 0.0004427343
        %v410 = vsel %vm409, %v407, %v404
        %v411 = vadd.f32 %v331, 1.0
        %v412 = vlog2.pop %v411
        %v413 = vmul.f32 %v412, 0.6931472
        %v414 = vmul.f32 -0.5, %v331
        %v415 = vadd.f32 %v414, 1.0
        %v416 = vmul.f32 %v415, %v331
        %v417 = vand.u32 2147483647, %v331
        %vm418 = vcmp.lt.f32.partialorder %v417, 0.0004427343
        %v419 = vsel %vm418, %v416, %v413
        %v420 = vadd.f32 %v333, 1.0
        %v421 = vlog2.pop %v420
        %v422 = vmul.f32 %v421, 0.6931472
        %v423 = vmul.f32 -0.5, %v333
        %v424 = vadd.f32 %v423, 1.0
        %v425 = vmul.f32 %v424, %v333
        %v426 = vand.u32 2147483647, %v333
        %vm427 = vcmp.lt.f32.partialorder %v426, 0.0004427343
        %v428 = vsel %vm427, %v425, %v422
        %v429 = vadd.f32 %v335, 1.0
        %v430 = vlog2.pop %v429
        %v431 = vmul.f32 %v430, 0.6931472
        %v432 = vmul.f32 -0.5, %v335
        %v433 = vadd.f32 %v432, 1.0
        %v434 = vmul.f32 %v433, %v335
        %v435 = vand.u32 2147483647, %v335
        %vm436 = vcmp.lt.f32.partialorder %v435, 0.0004427343
        %v437 = vsel %vm436, %v434, %v431
        %v438 = vadd.f32 %v337, 1.0
        %v439 = vlog2.pop %v438
        %v440 = vmul.f32 %v439, 0.6931472
        %v441 = vmul.f32 -0.5, %v337
        %v442 = vadd.f32 %v441, 1.0
        %v443 = vmul.f32 %v442, %v337
        %v444 = vand.u32 2147483647, %v337
        %vm445 = vcmp.lt.f32.partialorder %v444, 0.0004427343
        %v446 = vsel %vm445, %v443, %v440
        %v447 = vadd.f32 %v339, 1.0
        %v448 = vlog2.pop %v447
        %v449 = vmul.f32 %v448, 0.6931472
        %v450 = vmul.f32 -0.5, %v339
        %v451 = vadd.f32 %v450, 1.0
        %v452 = vmul.f32 %v451, %v339
        %v453 = vand.u32 2147483647, %v339
        %vm454 = vcmp.lt.f32.partialorder %v453, 0.0004427343
        %v455 = vsel %vm454, %v452, %v449
        %v456 = vadd.f32 %v341, 1.0
        %v457 = vlog2.pop %v456
        %v458 = vmul.f32 %v457, 0.6931472
        %v459 = vmul.f32 -0.5, %v341
        %v460 = vadd.f32 %v459, 1.0
        %v461 = vmul.f32 %v460, %v341
        %v462 = vand.u32 2147483647, %v341
        %vm463 = vcmp.lt.f32.partialorder %v462, 0.0004427343
        %v464 = vsel %vm463, %v461, %v458
        %v465 = vadd.f32 %v343, 1.0
        %v466 = vlog2.pop %v465
        %v467 = vmul.f32 %v466, 0.6931472
        %v468 = vmul.f32 -0.5, %v343
        %v469 = vadd.f32 %v468, 1.0
        %v470 = vmul.f32 %v469, %v343
        %v471 = vand.u32 2147483647, %v343
        %vm472 = vcmp.lt.f32.partialorder %v471, 0.0004427343
        %v473 = vsel %vm472, %v470, %v467
        %v474 = vadd.f32 %v345, 1.0
        %v475 = vlog2.pop %v474
        %v476 = vmul.f32 %v475, 0.6931472
        %v477 = vmul.f32 -0.5, %v345
        %v478 = vadd.f32 %v477, 1.0
        %v479 = vmul.f32 %v478, %v345
        %v480 = vand.u32 2147483647, %v345
        %vm481 = vcmp.lt.f32.partialorder %v480, 0.0004427343
        %v482 = vsel %vm481, %v479, %v476
        %v483 = vadd.f32 %v347, 1.0
        %v484 = vlog2.pop %v483
        %v485 = vmul.f32 %v484, 0.6931472
        %v486 = vmul.f32 -0.5, %v347
        %v487 = vadd.f32 %v486, 1.0
        %v488 = vmul.f32 %v487, %v347
        %v489 = vand.u32 2147483647, %v347
        %vm490 = vcmp.lt.f32.partialorder %v489, 0.0004427343
        %v491 = vsel %vm490, %v488, %v485
        %v492 = vsub.f32 %v268, %v356
        %v493 = vsub.f32 %v269, %v365
        %v494 = vsub.f32 %v270, %v374
        %v495 = vsub.f32 %v271, %v383
        %v496 = vsub.f32 %v272, %v392
        %v497 = vsub.f32 %v273, %v401
        %v498 = vsub.f32 %v274, %v410
        %v499 = vsub.f32 %v275, %v419
        %v500 = vsub.f32 %v276, %v428
        %v501 = vsub.f32 %v277, %v437
        %v502 = vsub.f32 %v278, %v446
        %v503 = vsub.f32 %v279, %v455
        %v504 = vsub.f32 %v280, %v464
        %v505 = vsub.f32 %v281, %v473
        %v506 = vsub.f32 %v282, %v482
        %v507 = vsub.f32 %v283, %v491
        %vm508 = vcmp.lt.s32.totalorder %v176, 200
        %vm509 = vcmp.lt.s32.totalorder %v177, 200
        %vm510 = vcmp.lt.s32.totalorder %v178, 200
        %vm511 = vcmp.lt.s32.totalorder %v179, 200
        %vm512 = vcmp.lt.s32.totalorder %v180, 200
        %vm513 = vcmp.lt.s32.totalorder %v181, 200
        %vm514 = vcmp.lt.s32.totalorder %v182, 200
        %vm515 = vcmp.lt.s32.totalorder %v183, 200
        %v516 = vsel %vm508, 1, 0
        %v517 = vsel %vm509, 1, 0
        %v518 = vsel %vm510, 1, 0
        %v519 = vsel %vm511, 1, 0
        %v520 = vsel %vm512, 1, 0
        %v521 = vsel %vm513, 1, 0
        %v522 = vsel %vm514, 1, 0
        %v523 = vsel %vm515, 1, 0
        %vm524 = vcmp.eq.s32.totalorder %v516, 1
        %vm525 = vcmp.eq.s32.totalorder %v517, 1
        %vm526 = vcmp.eq.s32.totalorder %v518, 1
        %vm527 = vcmp.eq.s32.totalorder %v519, 1
        %vm528 = vcmp.eq.s32.totalorder %v520, 1
        %vm529 = vcmp.eq.s32.totalorder %v521, 1
        %vm530 = vcmp.eq.s32.totalorder %v522, 1
        %vm531 = vcmp.eq.s32.totalorder %v523, 1
        %v532 = vsel %vm524, %v492, 0.0
        %v533 = vsel %vm524, %v493, 0.0
        %v534 = vsel %vm525, %v494, 0.0
        %v535 = vsel %vm525, %v495, 0.0
        %v536 = vsel %vm526, %v496, 0.0
        %v537 = vsel %vm526, %v497, 0.0
        %v538 = vsel %vm527, %v498, 0.0
        %v539 = vsel %vm527, %v499, 0.0
        %v540 = vsel %vm528, %v500, 0.0
        %v541 = vsel %vm528, %v501, 0.0
        %v542 = vsel %vm529, %v502, 0.0
        %v543 = vsel %vm529, %v503, 0.0
        %v544 = vsel %vm530, %v504, 0.0
        %v545 = vsel %vm530, %v505, 0.0
        %v546 = vsel %vm531, %v506, 0.0
        %v547 = vsel %vm531, %v507, 0.0
        %v548 = vadd.f32 %v532, %v534
        %v549 = vadd.f32 %v548, %v536
        %v550 = vadd.f32 %v549, %v538
        %v551 = vadd.f32 %v550, %v540
        %v552 = vadd.f32 %v551, %v542
        %v553 = vadd.f32 %v552, %v544
        %v554 = vadd.f32 %v553, %v546
        %v555 = vrot.slane %v554, 4
        %v556 = vadd.f32 %v554, %v555
        %v557 = vrot.slane %v556, 2
        %v558 = vadd.f32 %v556, %v557
        %v559 = vrot.slane %v558, 1
        %v560 = vadd.f32 %v558, %v559
        %v561 = vsel %vm219, %v533, 0.0
        %v562 = vsel %vm219, %v535, 0.0
        %v563 = vadd.f32 %v561, %v562
        %v564 = vsel %vm219, %v537, 0.0
        %v565 = vadd.f32 %v563, %v564
        %v566 = vsel %vm219, %v539, 0.0
        %v567 = vadd.f32 %v565, %v566
        %v568 = vsel %vm219, %v541, 0.0
        %v569 = vadd.f32 %v567, %v568
        %v570 = vsel %vm219, %v543, 0.0
        %v571 = vadd.f32 %v569, %v570
        %v572 = vsel %vm219, %v545, 0.0
        %v573 = vadd.f32 %v571, %v572
        %v574 = vsel %vm219, %v547, 0.0
        %v575 = vadd.f32 %v573, %v574
        %v576 = vrot.slane %v575, 4
        %v577 = vadd.f32 %v575, %v576
        %v578 = vrot.slane %v577, 2
        %v579 = vadd.f32 %v577, %v578
        %v580 = vrot.slane %v579, 1
        %v581 = vadd.f32 %v579, %v580
        %v584 = vcombine.low %v560, %v581
        %v586 = vunpack.c.l.s4 1966171168
        %v587 = vunpack.c.0.s8 %v586
        %v588 = vlaneseq
        %v589 = vshrl.u32 %v588, 7
        %v590 = vsub.s32 %v587, %v589
        %v591 = vrot.slane %v584, %v590
        %v593 = vunpack.c.l.s4 1966171168
        %v594 = vunpack.c.0.s8 %v593
        %v595 = vlaneseq
        %v596 = vshrl.u32 %v595, 7
        %v597 = vsub.s32 %v594, %v596
        %v598 = vrot.slane %v591, %v597
        %v600 = vlaneseq
        %vm601 = vcmp.ge.s32.totalorder %v600, 0
        %vm602 = vcmp.lt.s32.totalorder %v600, 200
        %vm603 = vmand %vm601, %vm602
        %604 = vst.msk [vmem:[%s142] sm:$0x3] %vm603, %v598
        %s605 = sand.u32 %s52, 1
        %s606 = scalar_lea.sflag [#allocation4], %s605
        %s607 = sand.u32 %s52, 1
        %s608 = smul.addr %s607, 2
        %s609 = scalar_lea.vmem [#allocation5], %s608
        // Predicated region
        $region29: #{tpu_custom_call.1} parent=23 // pred_check
          %p610 = pneg %p62
        $region30: #{tpu_custom_call.1} parent=23 // pred_check_branch
          %612 = sbr.rel (%p610) target = $region32
        $region31: #{tpu_custom_call.1} parent=23 // pred_region
          %s614 = ssub.s32 32, 32
          %615 = vsyncadd %s606, %s614
          %s616 = smul.addr %s18, 2
          %s617 = smul.addr %s616, 16
          %s618 = scalar_lea.hbm %s1, %s617
          %s620 = sshll.u32 %s609, 4
          %s621 = int_to_ptr.vmem [resolvable:$true] %s620
          %623 = dma.vmem_to_hbm [thread:$0]  %s621, 32, %s618, %s606
        $region32: #{tpu_custom_call.1} parent=23 // pred_fallthru
          _
      $region24: #{tpu_custom_call.1} parent=5 // pred_fallthru
        _
      %p624 = scmp.le.s32.totalorder 2, %s13
      // Predicated region
      $region33: #{tpu_custom_call.1} parent=5 // pred_check
        %p625 = pneg %p624
      $region34: #{tpu_custom_call.1} parent=5 // pred_check_branch
        %627 = sbr.rel (%p625) target = $region36
      $region35: #{tpu_custom_call.1} parent=5 // pred_region
        %s628 = ssub.s32 %s13, 2
        // Predicated region
        $region37: #{tpu_custom_call.1} parent=35 // pred_check
          %p629 = pneg %p68
        $region38: #{tpu_custom_call.1} parent=35 // pred_check_branch
          %631 = sbr.rel (%p629) target = $region40
        $region39: #{tpu_custom_call.1} parent=35 // pred_region
          %s632 = sand.u32 %s53, 1
          %s633 = scalar_lea.sflag [#allocation4], %s632
          %s634 = sand.u32 %s53, 1
          %s635 = smul.addr %s634, 2
          %s636 = scalar_lea.vmem [#allocation5], %s635
          %637 = dma.done %s633, 32
        $region40: #{tpu_custom_call.1} parent=35 // pred_fallthru
          _
      $region36: #{tpu_custom_call.1} parent=5 // pred_fallthru
        _
    $region6: #{tpu_custom_call.1} parent=1 // loop_footer
      %s17 = sadd.s32 1, %s13
    $region7: #{tpu_custom_call.1} parent=1 // loop_footer_branch
      %12 = sbr.rel target = $region3
    $region8: #{tpu_custom_call.1} parent=1 // loop_exit
      _
    %638 = vsyncpa [#allocation3], 1
    %s639 = scalar_lea.sflag [#allocation3], 1
    %640 = vsyncpa %s639, 1
    %641 = vsyncpa [#allocation4], 1
    %s642 = scalar_lea.sflag [#allocation4], 1
    %643 = vsyncpa %s642, 1

</llo_original>
